<compile_context>
chip_gen: v7x
topology: tpu7x:2x2x1
jax: 0.10.0
libtpu: 0.0.40
codegen_flags: <defaults>
</compile_context>

<pallas_src>
import functools

import jax
import jax.numpy as jnp
from jax.experimental import pallas as pl
from jax.experimental.pallas import tpu as pltpu

_NEG_SLOPE = 0.2       # DGL GATConv LeakyReLU default
_MASK_BIAS = -1e30     # additive bias for non-edges


# ----------------------------------------------------------------------------
# Tile / VMEM budget helpers (generation aware)
# ----------------------------------------------------------------------------
def _vmem_limit_bytes():
    """~75% of physical VMEM, clamped to [32 MiB, 100 MiB]."""
    cap = 64 * 1024 * 1024  # conservative (v7x per-TensorCore) fallback
    try:
        info = pltpu.get_tpu_info()
        cap = int(getattr(info, "vmem_capacity_bytes", cap)) or cap
    except Exception:
        pass
    return int(min(max(cap * 3 // 4, 32 * 1024 * 1024), 100 * 1024 * 1024))


def _choose_dst_tile(n, requested=None):
    # dst tiles land in the second-to-last block dim: need %8==0 (or ==n).
    if requested is not None:
        assert n % requested == 0 and (requested % 8 == 0 or requested == n)
        return requested
    for t in (256, 128, 64, 32, 16, 8):
        if n % t == 0 and n // t >= 2:
            return t
    return n


def _choose_src_tile(n, requested=None):
    # src tiles land in the last block dim: need %128==0 (or ==n).
    if requested is not None:
        assert n % requested == 0 and (requested % 128 == 0 or requested == n)
        return requested
    for t in (512, 256, 128):
        if n % t == 0 and n // t >= 2:
            return t
    return n


# ----------------------------------------------------------------------------
# Kernel 1: per-layer projection (hoisted out of the attention grid)
# ----------------------------------------------------------------------------
def gat_project_kernel(h_ref, w_ref, albd_ref, arbd_ref, z_ref, el_ref, er_ref):
    """One row tile: z = h @ W, el = z @ albd, er = z @ arbd.

    h_ref  : (T, F_in)    w_ref   : (F_in, H*D)
    albd   : (H*D, H)     arbd    : (H*D, H)   (block-diagonal attn weights)
    z_ref  : (T, H*D)     el_ref/er_ref : (T, H)
    """
    z = jnp.dot(h_ref[...], w_ref[...], preferred_element_type=jnp.float32)
    z_ref[...] = z
    el_ref[...] = jnp.dot(z, albd_ref[...], preferred_element_type=jnp.float32)
    er_ref[...] = jnp.dot(z, arbd_ref[...], preferred_element_type=jnp.float32)


# ----------------------------------------------------------------------------
# Kernel 2: hidden GATConv layer (online softmax over src tiles, no attention
#           output, fused ReLU)
# ----------------------------------------------------------------------------
def gat_hidden_kernel(z_ref, er_ref, elT_ref, b_ref, adj_ref, out_ref,
                      m_sc, l_sc, acc_sc, *, num_heads, out_dim, apply_relu):
    """grid = (dst_tiles [parallel], src_tiles [arbitrary]).

    z_ref   : (Ts, H*D)  projected features of this src tile
    er_ref  : (T,  H)    dst-side attention logits
    elT_ref : (H,  Ts)   src-side attention logits, pre-transposed
    b_ref   : (1,  H*D)  bias, head-major flattened
    adj_ref : (T,  Ts)   adj[dst, src] in {0, 1}
    out_ref : (T,  H*D)  written on the last src step
    """
    j = pl.program_id(1)
    H, D = num_heads, out_dim

    @pl.when(j == 0)
    def _():
        m_sc[...] = jnp.full_like(m_sc, _MASK_BIAS)
        l_sc[...] = jnp.zeros_like(l_sc)
        acc_sc[...] = jnp.zeros_like(acc_sc)

    # One additive mask per tile (no per-head selects). Masked probabilities
    # underflow to exactly 0.f; bogus fully-masked tiles get wiped by the
    # online-softmax rescale once a valid (self-loop) tile is seen.
    mask_bias = jnp.where(adj_ref[...] > 0.0, jnp.float32(0.0),
                          jnp.float32(_MASK_BIAS))            # (T, Ts)
    z_src = z_ref[...]                                        # (Ts, H*D)
    er = er_ref[...]                                          # (T, H)
    elT = elT_ref[...]                                        # (H, Ts)

    for hd in range(H):                                       # static unroll
        e = er[:, hd:hd + 1] + elT[hd:hd + 1, :]              # (T, Ts)
        e = jnp.maximum(e, _NEG_SLOPE * e) + mask_bias        # leaky relu + mask
        m_prev = m_sc[:, hd:hd + 1]
        m_new = jnp.maximum(m_prev, jnp.max(e, axis=1, keepdims=True))
        alpha = jnp.exp(m_prev - m_new)                       # (T, 1)
        p = jnp.exp(e - m_new)                                # masked -> 0
        l_sc[:, hd:hd + 1] = alpha * l_sc[:, hd:hd + 1] + jnp.sum(
            p, axis=1, keepdims=True)
        acc_sc[:, hd * D:(hd + 1) * D] = (
            alpha * acc_sc[:, hd * D:(hd + 1) * D]
            + jnp.dot(p, z_src[:, hd * D:(hd + 1) * D],
                      preferred_element_type=jnp.float32))
        m_sc[:, hd:hd + 1] = m_new

    @pl.when(j == pl.num_programs(1) - 1)
    def _():
        for hd in range(H):
            denom = l_sc[:, hd:hd + 1]
            inv = pl.reciprocal(jnp.where(denom > 0, denom, 1.0), approx=True)
            o = (acc_sc[:, hd * D:(hd + 1) * D] * inv
                 + b_ref[:, hd * D:(hd + 1) * D])
            if apply_relu:
                o = jnp.maximum(o, 0.0)
            out_ref[:, hd * D:(hd + 1) * D] = o


# ----------------------------------------------------------------------------
# Kernel 3: final GATConv layer (full src block, attention output)
# ----------------------------------------------------------------------------
def gat_attn_kernel(z_ref, er_ref, elT_ref, b_ref, adj_ref, out_ref, attn_ref,
                    *, num_heads, out_dim):
    """grid = (dst_tiles [parallel],).

    z_ref    : (N, H*D)   all projected src features (resident)
    er_ref   : (T, H)     elT_ref : (H, N)     b_ref : (1, H*D)
    adj_ref  : (T, N)
    out_ref  : (T, H*D)   attn_ref : (H, T, N) per-head attention rows
    """
    H, D = num_heads, out_dim
    mask_bias = jnp.where(adj_ref[...] > 0.0, jnp.float32(0.0),
                          jnp.float32(_MASK_BIAS))            # (T, N)
    z = z_ref[...]
    er = er_ref[...]
    elT = elT_ref[...]

    for hd in range(H):                                       # static unroll
        e = er[:, hd:hd + 1] + elT[hd:hd + 1, :]              # (T, N)
        e = jnp.maximum(e, _NEG_SLOPE * e) + mask_bias
        m = jnp.max(e, axis=1, keepdims=True)
        p = jnp.exp(e - m)                                    # masked -> exactly 0
        denom = jnp.sum(p, axis=1, keepdims=True)
        # Exact reciprocal: attention is a user-visible output (rows sum to 1).
        a = p / jnp.where(denom > 0, denom, 1.0)
        out_ref[:, hd * D:(hd + 1) * D] = (
            jnp.dot(a, z[:, hd * D:(hd + 1) * D],
                    preferred_element_type=jnp.float32)
            + b_ref[:, hd * D:(hd + 1) * D])
        attn_ref[hd, :, :] = a                                # lane-dense (T, N)


# ----------------------------------------------------------------------------
# One GATConv layer (projection pallas_call + attention pallas_call)
# ----------------------------------------------------------------------------
def gat_conv(h, W, al, ar, bias, adj, *, num_heads, out_dim, with_attn,
             apply_relu=False, tile_dst=None, tile_src=None):
    N, f_in = h.shape
    H, D = num_heads, out_dim
    hd_dim = H * D
    t = _choose_dst_tile(N, tile_dst)
    ts = _choose_src_tile(N, tile_src)
    vmem_limit = _vmem_limit_bytes()

    # Block-diagonal attention projections: albd[h*D + d, h2] = al[d, h]*(h==h2)
    eye_h = jnp.eye(H, dtype=jnp.float32)
    albd = (al.T[:, :, None] * eye_h[:, None, :]).reshape(hd_dim, H)
    arbd = (ar.T[:, :, None] * eye_h[:, None, :]).reshape(hd_dim, H)
    b_flat = bias.reshape(1, hd_dim)

    # ---- 1) Hoisted projection: once per layer, not once per dst tile. -----
    z, el, er = pl.pallas_call(
        gat_project_kernel,
        grid=(N // t,),
        in_specs=[
            pl.BlockSpec((t, f_in), lambda i: (i, 0)),
            pl.BlockSpec((f_in, hd_dim), lambda i: (0, 0)),
            pl.BlockSpec((hd_dim, H), lambda i: (0, 0)),
            pl.BlockSpec((hd_dim, H), lambda i: (0, 0)),
        ],
        out_specs=(
            pl.BlockSpec((t, hd_dim), lambda i: (i, 0)),
            pl.BlockSpec((t, H), lambda i: (i, 0)),
            pl.BlockSpec((t, H), lambda i: (i, 0)),
        ),
        out_shape=(
            jax.ShapeDtypeStruct((N, hd_dim), jnp.float32),
            jax.ShapeDtypeStruct((N, H), jnp.float32),
            jax.ShapeDtypeStruct((N, H), jnp.float32),
        ),
        compiler_params=pltpu.CompilerParams(
            dimension_semantics=("parallel",),
            vmem_limit_bytes=vmem_limit),
    )(h, W, albd, arbd)

    el_T = el.T  # tiny (N, H) -> (H, N), once per layer

    if not with_attn:
        # ---- 2a) Hidden layer: (dst x src) grid, online softmax, fused ReLU.
        kernel = functools.partial(gat_hidden_kernel, num_heads=H, out_dim=D,
                                   apply_relu=apply_relu)
        return pl.pallas_call(
            kernel,
            grid=(N // t, N // ts),
            in_specs=[
                pl.BlockSpec((ts, hd_dim), lambda i, j: (j, 0)),  # z (src tile)
                pl.BlockSpec((t, H), lambda i, j: (i, 0)),        # er (dst tile)
                pl.BlockSpec((H, ts), lambda i, j: (0, j)),       # el^T (src tile)
                pl.BlockSpec((1, hd_dim), lambda i, j: (0, 0)),   # bias
                pl.BlockSpec((t, ts), lambda i, j: (i, j)),       # adj tile
            ],
            out_specs=pl.BlockSpec((t, hd_dim), lambda i, j: (i, 0)),
            out_shape=jax.ShapeDtypeStruct((N, hd_dim), jnp.float32),
            scratch_shapes=[
                pltpu.VMEM((t, H), jnp.float32),       # running max
                pltpu.VMEM((t, H), jnp.float32),       # running sum
                pltpu.VMEM((t, hd_dim), jnp.float32),  # running weighted sum
            ],
            compiler_params=pltpu.CompilerParams(
                dimension_semantics=("parallel", "arbitrary"),
                vmem_limit_bytes=vmem_limit),
        )(z, er, el_T, b_flat, adj)

    # ---- 2b) Final layer: dst grid with full src block + attention output.
    # TODO(synk): src-tile this layer too (two-pass softmax) and emit the
    #             attention matrix in bf16 for very large N.
    kernel = functools.partial(gat_attn_kernel, num_heads=H, out_dim=D)
    out, attn = pl.pallas_call(
        kernel,
        grid=(N // t,),
        in_specs=[
            pl.BlockSpec((N, hd_dim), lambda i: (0, 0)),          # z (all src)
            pl.BlockSpec((t, H), lambda i: (i, 0)),               # er (dst tile)
            pl.BlockSpec((H, N), lambda i: (0, 0)),               # el^T (all src)
            pl.BlockSpec((1, hd_dim), lambda i: (0, 0)),          # bias
            pl.BlockSpec((t, N), lambda i: (i, 0)),               # adj dst tile
        ],
        out_specs=(
            pl.BlockSpec((t, hd_dim), lambda i: (i, 0)),
            pl.BlockSpec((H, t, N), lambda i: (0, i, 0)),
        ),
        out_shape=(
            jax.ShapeDtypeStruct((N, hd_dim), jnp.float32),
            jax.ShapeDtypeStruct((H, N, N), jnp.float32),
        ),
        compiler_params=pltpu.CompilerParams(
            dimension_semantics=("parallel",),
            vmem_limit_bytes=vmem_limit),
    )(z, er, el_T, b_flat, adj)
    return out, attn


# ----------------------------------------------------------------------------
# GAT forward (glue in plain JAX)
# ----------------------------------------------------------------------------
def gat_forward(adj, x, params, *, num_heads, out_dim, n_layers,
                tile_dst=None, tile_src=None):
    N = x.shape[0]
    h = x  # dropout / Dropout2d / feat_drop / attn_drop are identity at inference
    for l in range(n_layers - 1):
        p = params[l]
        h = gat_conv(h, p["W"], p["al"], p["ar"], p["b"], adj,
                     num_heads=num_heads, out_dim=out_dim,
                     with_attn=False, apply_relu=True,
                     tile_dst=tile_dst, tile_src=tile_src)
        # TODO(synk): hand h to the next layer as bf16 to halve HBM traffic.
    p = params[-1]
    out_flat, attn_hnn = gat_conv(h, p["W"], p["al"], p["ar"], p["b"], adj,
                                  num_heads=num_heads, out_dim=out_dim,
                                  with_attn=True, apply_relu=False,
                                  tile_dst=tile_dst, tile_src=tile_src)
    h_mean = out_flat.reshape(N, num_heads, out_dim).mean(axis=1)   # (N, D)
    attn = attn_hnn.transpose(1, 2, 0)                              # (dst, src, H)
    return h_mean, attn


# ----------------------------------------------------------------------------
# Pure-JAX reference (same math, no Pallas) for correctness checking
# ----------------------------------------------------------------------------
def gat_layer_ref(h, W, al, ar, b, adj, *, num_heads, out_dim):
    N = h.shape[0]
    z = (h @ W).reshape(N, num_heads, out_dim)                 # (N, H, D)
    el = jnp.einsum("nhd,dh->nh", z, al)                       # (N, H)
    er = jnp.einsum("nhd,dh->nh", z, ar)                       # (N, H)
    e = er[:, None, :] + el[None, :, :]                        # (dst, src, H)
    e = jnp.where(e > 0, e, 0.2 * e)
    e = jnp.where(adj[:, :, None] > 0, e, -1e30)
    m = jnp.max(e, axis=1, keepdims=True)
    p = jnp.where(adj[:, :, None] > 0, jnp.exp(e - m), 0.0)
    denom = jnp.sum(p, axis=1, keepdims=True)
    a = p / jnp.where(denom > 0, denom, 1.0)                   # (dst, src, H)
    out = jnp.einsum("vuh,uhd->vhd", a, z) + b[None, :, :]     # (N, H, D)
    return out, a


def gat_forward_ref(adj, x, params, *, num_heads, out_dim, n_layers):
    N = x.shape[0]
    h = x
    for l in range(n_layers - 1):
        p = params[l]
        out, _ = gat_layer_ref(h, p["W"], p["al"], p["ar"], p["b"], adj,
                               num_heads=num_heads, out_dim=out_dim)
        h = jax.nn.relu(out.reshape(N, num_heads * out_dim))
    p = params[-1]
    out, a = gat_layer_ref(h, p["W"], p["al"], p["ar"], p["b"], adj,
                           num_heads=num_heads, out_dim=out_dim)
    return jnp.mean(out, axis=1), a


# ----------------------------------------------------------------------------
# Main
# ----------------------------------------------------------------------------
if __name__ == "__main__":
    # out_dim == in_dim so layer stacking is shape-consistent (the PyTorch
    # __init__ passes in_dim * num_heads as the hidden-layer input width).
    N = 256          # graph nodes: 2 dst tiles x 2 src tiles exercises both grids
    IN_DIM = 8
    OUT_DIM = 8
    NUM_HEADS = 4
    N_LAYERS = 2
    TILE_DST = 128   # "parallel" dst-row axis
    TILE_SRC = 128   # "arbitrary" src-column (online-softmax) axis

    key = jax.random.PRNGKey(0)
    k_x, k_adj, k_w = jax.random.split(key, 3)

    # Node features.
    x = jax.random.normal(k_x, (N, IN_DIM), dtype=jnp.float32)

    # Dense adjacency adj[dst, src] with self-loops (every node has in-degree
    # >= 1, required by the additive-mask / exp-underflow softmax).
    adj = (jax.random.uniform(k_adj, (N, N)) < 0.1).astype(jnp.float32)
    adj = jnp.maximum(adj, jnp.eye(N, dtype=jnp.float32))

    # Deterministic parameter init (shapes from GATConv.__init__).
    params = []
    in_dims = [IN_DIM] + [IN_DIM * NUM_HEADS] * (N_LAYERS - 1)
    for l, fin in enumerate(in_dims):
        kw, ka, kr, k_w = jax.random.split(jax.random.fold_in(k_w, l), 4)
        params.append({
            "W":  0.1 * jax.random.normal(kw, (fin, NUM_HEADS * OUT_DIM), jnp.float32),
            "al": 0.1 * jax.random.normal(ka, (OUT_DIM, NUM_HEADS), jnp.float32),
            "ar": 0.1 * jax.random.normal(kr, (OUT_DIM, NUM_HEADS), jnp.float32),
            "b":  jnp.zeros((NUM_HEADS, OUT_DIM), jnp.float32),
        })

    h_out, attn = gat_forward(adj, x, params,
                              num_heads=NUM_HEADS, out_dim=OUT_DIM,
                              n_layers=N_LAYERS,
                              tile_dst=TILE_DST, tile_src=TILE_SRC)
    h_out = jax.block_until_ready(h_out)
    attn = jax.block_until_ready(attn)

    # Correctness check against pure-JAX reference (tolerance absorbs the
    # approximate-reciprocal normalization used on hidden layers).
    h_ref, attn_ref = gat_forward_ref(adj, x, params,
                                      num_heads=NUM_HEADS, out_dim=OUT_DIM,
                                      n_layers=N_LAYERS)
    assert h_out.shape == (N, OUT_DIM)
    assert attn.shape == (N, N, NUM_HEADS)
    assert jnp.allclose(h_out, h_ref, atol=2e-3, rtol=2e-3)
    assert jnp.allclose(attn, attn_ref, atol=2e-3, rtol=2e-3)

    print("KERNEL_OK")
</pallas_src>

<mosaic_0001>
module attributes {stable_mosaic.version = 11 : i64} {
  func.func @gat_project_kernel(%arg0: i32, %arg1: memref<128x8xf32, #tpu.memory_space<vmem>>, %arg2: memref<8x32xf32, #tpu.memory_space<vmem>>, %arg3: memref<32x4xf32, #tpu.memory_space<vmem>>, %arg4: memref<32x4xf32, #tpu.memory_space<vmem>>, %arg5: memref<128x32xf32, #tpu.memory_space<vmem>>, %arg6: memref<128x4xf32, #tpu.memory_space<vmem>>, %arg7: memref<128x4xf32, #tpu.memory_space<vmem>>) attributes {dimension_semantics = [#tpu.dimension_semantics<parallel>], iteration_bounds = array<i64: 2>, scalar_prefetch = 0 : i64, scratch_operands = 0 : i64, tpu.core_type = #tpu.core_type<tc>, window_params = [{transform_indices = @transform_0, window_bounds = array<i64: 128, 8>}, {pipeline_mode = #tpu.pipeline_mode<synchronous>, transform_indices = @transform_1, window_bounds = array<i64: 8, 32>}, {pipeline_mode = #tpu.pipeline_mode<synchronous>, transform_indices = @transform_2, window_bounds = array<i64: 32, 4>}, {pipeline_mode = #tpu.pipeline_mode<synchronous>, transform_indices = @transform_3, window_bounds = array<i64: 32, 4>}, {transform_indices = @transform_4, window_bounds = array<i64: 128, 32>}, {transform_indices = @transform_5, window_bounds = array<i64: 128, 4>}, {transform_indices = @transform_6, window_bounds = array<i64: 128, 4>}]} {
    %c0 = arith.constant 0 : index
    %c0_0 = arith.constant 0 : index
    %0 = vector.load %arg1[%c0, %c0_0] : memref<128x8xf32, #tpu.memory_space<vmem>>, vector<128x8xf32>
    %c0_1 = arith.constant 0 : index
    %c0_2 = arith.constant 0 : index
    %1 = vector.load %arg2[%c0_1, %c0_2] : memref<8x32xf32, #tpu.memory_space<vmem>>, vector<8x32xf32>
    %cst = arith.constant dense<0.000000e+00> : vector<128x32xf32>
    %2 = tpu.matmul %0, %1, %cst {dimension_numbers = #tpu.dot_dimension_numbers<[1], [0], [0], [1], [0, 0, 1, 1], [], []>} : vector<128x8xf32>, vector<8x32xf32>, vector<128x32xf32> -> vector<128x32xf32>
    %c0_3 = arith.constant 0 : index
    %c0_4 = arith.constant 0 : index
    %3 = vector.load %arg5[%c0_3, %c0_4] : memref<128x32xf32, #tpu.memory_space<vmem>>, vector<128x32xf32>
    tpu.vector_store %arg5[%c0_3, %c0_4], %2 {strides = array<i32>} : memref<128x32xf32, #tpu.memory_space<vmem>>, vector<128x32xf32>,
    %c0_5 = arith.constant 0 : index
    %c0_6 = arith.constant 0 : index
    %4 = vector.load %arg3[%c0_5, %c0_6] : memref<32x4xf32, #tpu.memory_space<vmem>>, vector<32x4xf32>
    %cst_7 = arith.constant dense<0.000000e+00> : vector<128x4xf32>
    %5 = tpu.matmul %2, %4, %cst_7 {dimension_numbers = #tpu.dot_dimension_numbers<[1], [0], [0], [1], [0, 0, 1, 1], [], []>} : vector<128x32xf32>, vector<32x4xf32>, vector<128x4xf32> -> vector<128x4xf32>
    %c0_8 = arith.constant 0 : index
    %c0_9 = arith.constant 0 : index
    %6 = vector.load %arg6[%c0_8, %c0_9] : memref<128x4xf32, #tpu.memory_space<vmem>>, vector<128x4xf32>
    tpu.vector_store %arg6[%c0_8, %c0_9], %5 {strides = array<i32>} : memref<128x4xf32, #tpu.memory_space<vmem>>, vector<128x4xf32>,
    %c0_10 = arith.constant 0 : index
    %c0_11 = arith.constant 0 : index
    %7 = vector.load %arg4[%c0_10, %c0_11] : memref<32x4xf32, #tpu.memory_space<vmem>>, vector<32x4xf32>
    %cst_12 = arith.constant dense<0.000000e+00> : vector<128x4xf32>
    %8 = tpu.matmul %2, %7, %cst_12 {dimension_numbers = #tpu.dot_dimension_numbers<[1], [0], [0], [1], [0, 0, 1, 1], [], []>} : vector<128x32xf32>, vector<32x4xf32>, vector<128x4xf32> -> vector<128x4xf32>
    %c0_13 = arith.constant 0 : index
    %c0_14 = arith.constant 0 : index
    %9 = vector.load %arg7[%c0_13, %c0_14] : memref<128x4xf32, #tpu.memory_space<vmem>>, vector<128x4xf32>
    tpu.vector_store %arg7[%c0_13, %c0_14], %8 {strides = array<i32>} : memref<128x4xf32, #tpu.memory_space<vmem>>, vector<128x4xf32>,
    return
  }
  func.func @transform_0(%arg0: i32) -> (i32, i32) {
    %c0_i32 = arith.constant 0 : i32
    %c0_i32_0 = arith.constant 0 : i32
    return %arg0, %c0_i32 : i32, i32
  }
  func.func @transform_1(%arg0: i32) -> (i32, i32) {
    %c0_i32 = arith.constant 0 : i32
    %c0_i32_0 = arith.constant 0 : i32
    %c0_i32_1 = arith.constant 0 : i32
    return %c0_i32, %c0_i32_0 : i32, i32
  }
  func.func @transform_2(%arg0: i32) -> (i32, i32) {
    %c0_i32 = arith.constant 0 : i32
    %c0_i32_0 = arith.constant 0 : i32
    %c0_i32_1 = arith.constant 0 : i32
    return %c0_i32, %c0_i32_0 : i32, i32
  }
  func.func @transform_3(%arg0: i32) -> (i32, i32) {
    %c0_i32 = arith.constant 0 : i32
    %c0_i32_0 = arith.constant 0 : i32
    %c0_i32_1 = arith.constant 0 : i32
    return %c0_i32, %c0_i32_0 : i32, i32
  }
  func.func @transform_4(%arg0: i32) -> (i32, i32) {
    %c0_i32 = arith.constant 0 : i32
    %c0_i32_0 = arith.constant 0 : i32
    return %arg0, %c0_i32 : i32, i32
  }
  func.func @transform_5(%arg0: i32) -> (i32, i32) {
    %c0_i32 = arith.constant 0 : i32
    %c0_i32_0 = arith.constant 0 : i32
    return %arg0, %c0_i32 : i32, i32
  }
  func.func @transform_6(%arg0: i32) -> (i32, i32) {
    %c0_i32 = arith.constant 0 : i32
    %c0_i32_0 = arith.constant 0 : i32
    return %arg0, %c0_i32 : i32, i32
  }
}

</mosaic_0001>

<llo_original>
// kernel: tpu_custom_call.1
$region0: #{tpu_custom_call.1}
  #allocation0 [shape = 'u32[]', space=smem, size = 0x4, offset = 0x4, fixed_abs, tag = 'smem constant byte address 0x4 - core index']
  #allocation1 [shape = 'u32[144,128]{1,0:T(1,128)}', space=vmem, size = 0x12000, scoped, tag = 'internal scratch']
  %s0 = inlined_call_operand.vmem [shape: f32[256,8], index: 0, kind: input, shape index: {}]
  %s1 = inlined_call_operand.vmem [shape: f32[8,32], index: 1, kind: input, shape index: {}]
  %s2 = inlined_call_operand.vmem [shape: f32[32,4], index: 2, kind: input, shape index: {}]
  %s3 = inlined_call_operand.vmem [shape: f32[32,4], index: 3, kind: input, shape index: {}]
  %s4 = inlined_call_operand.vmem [shape: f32[256,32], index: 4, kind: output, shape index: {0}]
  %s5 = inlined_call_operand.vmem [shape: f32[256,4], index: 5, kind: output, shape index: {1}]
  %s6 = inlined_call_operand.vmem [shape: f32[256,4], index: 6, kind: output, shape index: {2}]
  %7 = xla_tuple %s4, %s5, %s6
  %s8 = sld [smem:[#allocation0]]
  $region65: #{tpu_custom_call.1} parent=0
    _
  %s10 = ssub.s32 1, %s8
  %s11 = scalar_select 0, %s10, %s8
  loop: start=0, step=1, limit=4
  $region2: #{tpu_custom_call.1} parent=0 // loop_pre_header
    _
  $region3: #{tpu_custom_call.1} parent=0 // loop_header
    %s13 = sphi 0, %s17
    %p14 = scmp.ge.s32.totalorder %s13, 4
    %s23 = sphi 0, %s25
    %s26 = sphi 0, %s23
    %s27 = sphi 0, %s26
    %s43 = sphi 0, %s27
    %s47 = sphi 0, %s47
    %s49 = sphi 0, %s47
    %s50 = sphi 0, %s49
    %s64 = sphi 0, %s50
    %s68 = sphi 0, %s68
    %s70 = sphi 0, %s68
    %s71 = sphi 0, %s70
    %s85 = sphi 0, %s71
    %s89 = sphi 0, %s89
    %s91 = sphi 0, %s89
    %s92 = sphi 0, %s91
    %s106 = sphi 0, %s92
    %s112 = sphi 0, %s114
    %s115 = sphi 0, %s112
    %s116 = sphi 0, %s115
    %s132 = sphi 0, %s116
    %s138 = sphi 0, %s140
    %s141 = sphi 0, %s138
    %s142 = sphi 0, %s141
    %s158 = sphi 0, %s142
    %s164 = sphi 0, %s166
    %s167 = sphi 0, %s164
    %s168 = sphi 0, %s167
    %s184 = sphi 0, %s168
  $region4: #{tpu_custom_call.1} parent=0 // loop_header_branch
    %16 = sbr.rel (%p14) target = $region8
  $region5: #{tpu_custom_call.1} parent=0 // loop_body
    %s18 = ssub.s32 %s13, 1
    %s19 = ssub.s32 %s13, 2
    %s20 = sadd.s32 %s13, 1
    %s21 = ssub.s32 %s13, %s20
    %p22 = scmp.eq.s32.totalorder %s21, 0
    %s24 = sadd.s32 %s23, 1
    %s25 = scalar_select %p22, %s23, %s24
    %p28 = pneg %p22
    %p29 = scmp.eq.s32.totalorder %s13, 1
    %p30 = por %p28, %p29
    %p31 = scmp.ne.s32.totalorder %s23, %s26
    %p32 = scmp.eq.s32.totalorder %s13, 0
    %p33 = por %p31, %p32
    %p34 = scmp.ne.s32.totalorder %s23, %s26
    %p35 = scmp.eq.s32.totalorder %s18, 1
    %p36 = por %p34, %p35
    %p37 = scmp.ne.s32.totalorder %s26, %s27
    %p38 = scmp.eq.s32.totalorder %s18, 0
    %p39 = por %p37, %p38
    %p40 = scmp.ne.s32.totalorder %s26, %s27
    %p41 = scmp.eq.s32.totalorder %s19, 1
    %p42 = por %p40, %p41
    %p44 = scmp.ne.s32.totalorder %s27, %s43
    %p45 = scmp.eq.s32.totalorder %s19, 0
    %p46 = por %p44, %p45
    %s48 = sadd.s32 %s47, 1
    %p51 = scmp.eq.s32.totalorder %s13, 1
    %p52 = scmp.ne.s32.totalorder %s47, %s49
    %p53 = scmp.eq.s32.totalorder %s13, 0
    %p54 = por %p52, %p53
    %p55 = scmp.ne.s32.totalorder %s47, %s49
    %p56 = scmp.eq.s32.totalorder %s18, 1
    %p57 = por %p55, %p56
    %p58 = scmp.ne.s32.totalorder %s49, %s50
    %p59 = scmp.eq.s32.totalorder %s18, 0
    %p60 = por %p58, %p59
    %p61 = scmp.ne.s32.totalorder %s49, %s50
    %p62 = scmp.eq.s32.totalorder %s19, 1
    %p63 = por %p61, %p62
    %p65 = scmp.ne.s32.totalorder %s50, %s64
    %p66 = scmp.eq.s32.totalorder %s19, 0
    %p67 = por %p65, %p66
    %s69 = sadd.s32 %s68, 1
    %p72 = scmp.eq.s32.totalorder %s13, 1
    %p73 = scmp.ne.s32.totalorder %s68, %s70
    %p74 = scmp.eq.s32.totalorder %s13, 0
    %p75 = por %p73, %p74
    %p76 = scmp.ne.s32.totalorder %s68, %s70
    %p77 = scmp.eq.s32.totalorder %s18, 1
    %p78 = por %p76, %p77
    %p79 = scmp.ne.s32.totalorder %s70, %s71
    %p80 = scmp.eq.s32.totalorder %s18, 0
    %p81 = por %p79, %p80
    %p82 = scmp.ne.s32.totalorder %s70, %s71
    %p83 = scmp.eq.s32.totalorder %s19, 1
    %p84 = por %p82, %p83
    %p86 = scmp.ne.s32.totalorder %s71, %s85
    %p87 = scmp.eq.s32.totalorder %s19, 0
    %p88 = por %p86, %p87
    %s90 = sadd.s32 %s89, 1
    %p93 = scmp.eq.s32.totalorder %s13, 1
    %p94 = scmp.ne.s32.totalorder %s89, %s91
    %p95 = scmp.eq.s32.totalorder %s13, 0
    %p96 = por %p94, %p95
    %p97 = scmp.ne.s32.totalorder %s89, %s91
    %p98 = scmp.eq.s32.totalorder %s18, 1
    %p99 = por %p97, %p98
    %p100 = scmp.ne.s32.totalorder %s91, %s92
    %p101 = scmp.eq.s32.totalorder %s18, 0
    %p102 = por %p100, %p101
    %p103 = scmp.ne.s32.totalorder %s91, %s92
    %p104 = scmp.eq.s32.totalorder %s19, 1
    %p105 = por %p103, %p104
    %p107 = scmp.ne.s32.totalorder %s92, %s106
    %p108 = scmp.eq.s32.totalorder %s19, 0
    %p109 = por %p107, %p108
    %s110 = ssub.s32 %s13, %s20
    %p111 = scmp.eq.s32.totalorder %s110, 0
    %s113 = sadd.s32 %s112, 1
    %s114 = scalar_select %p111, %s112, %s113
    %p117 = pneg %p111
    %p118 = scmp.eq.s32.totalorder %s13, 1
    %p119 = por %p117, %p118
    %p120 = scmp.ne.s32.totalorder %s112, %s115
    %p121 = scmp.eq.s32.totalorder %s13, 0
    %p122 = por %p120, %p121
    %p123 = scmp.ne.s32.totalorder %s112, %s115
    %p124 = scmp.eq.s32.totalorder %s18, 1
    %p125 = por %p123, %p124
    %p126 = scmp.ne.s32.totalorder %s115, %s116
    %p127 = scmp.eq.s32.totalorder %s18, 0
    %p128 = por %p126, %p127
    %p129 = scmp.ne.s32.totalorder %s115, %s116
    %p130 = scmp.eq.s32.totalorder %s19, 1
    %p131 = por %p129, %p130
    %p133 = scmp.ne.s32.totalorder %s116, %s132
    %p134 = scmp.eq.s32.totalorder %s19, 0
    %p135 = por %p133, %p134
    %s136 = ssub.s32 %s13, %s20
    %p137 = scmp.eq.s32.totalorder %s136, 0
    %s139 = sadd.s32 %s138, 1
    %s140 = scalar_select %p137, %s138, %s139
    %p143 = pneg %p137
    %p144 = scmp.eq.s32.totalorder %s13, 1
    %p145 = por %p143, %p144
    %p146 = scmp.ne.s32.totalorder %s138, %s141
    %p147 = scmp.eq.s32.totalorder %s13, 0
    %p148 = por %p146, %p147
    %p149 = scmp.ne.s32.totalorder %s138, %s141
    %p150 = scmp.eq.s32.totalorder %s18, 1
    %p151 = por %p149, %p150
    %p152 = scmp.ne.s32.totalorder %s141, %s142
    %p153 = scmp.eq.s32.totalorder %s18, 0
    %p154 = por %p152, %p153
    %p155 = scmp.ne.s32.totalorder %s141, %s142
    %p156 = scmp.eq.s32.totalorder %s19, 1
    %p157 = por %p155, %p156
    %p159 = scmp.ne.s32.totalorder %s142, %s158
    %p160 = scmp.eq.s32.totalorder %s19, 0
    %p161 = por %p159, %p160
    %s162 = ssub.s32 %s13, %s20
    %p163 = scmp.eq.s32.totalorder %s162, 0
    %s165 = sadd.s32 %s164, 1
    %s166 = scalar_select %p163, %s164, %s165
    %p169 = pneg %p163
    %p170 = scmp.eq.s32.totalorder %s13, 1
    %p171 = por %p169, %p170
    %p172 = scmp.ne.s32.totalorder %s164, %s167
    %p173 = scmp.eq.s32.totalorder %s13, 0
    %p174 = por %p172, %p173
    %p175 = scmp.ne.s32.totalorder %s164, %s167
    %p176 = scmp.eq.s32.totalorder %s18, 1
    %p177 = por %p175, %p176
    %p178 = scmp.ne.s32.totalorder %s167, %s168
    %p179 = scmp.eq.s32.totalorder %s18, 0
    %p180 = por %p178, %p179
    %p181 = scmp.ne.s32.totalorder %s167, %s168
    %p182 = scmp.eq.s32.totalorder %s19, 1
    %p183 = por %p181, %p182
    %p185 = scmp.ne.s32.totalorder %s168, %s184
    %p186 = scmp.eq.s32.totalorder %s19, 0
    %p187 = por %p185, %p186
    %p188 = scmp.le.s32.totalorder 1, %s13
    %p189 = scmp.lt.s32.totalorder %s13, 3
    %p190 = pnand %p188, %p189
    %p191 = pneg %p190
    // Predicated region
    $region9: #{tpu_custom_call.1} parent=5 // pred_check
      _
    $region10: #{tpu_custom_call.1} parent=5 // pred_check_branch
      %193 = sbr.rel (%p190) target = $region12
    $region11: #{tpu_custom_call.1} parent=5 // pred_region
      %s194 = ssub.s32 %s13, 1
      // Predicated region
      $region13: #{tpu_custom_call.1} parent=11 // pred_check
        %p195 = pneg %p60
      $region14: #{tpu_custom_call.1} parent=11 // pred_check_branch
        %197 = sbr.rel (%p195) target = $region16
      $region15: #{tpu_custom_call.1} parent=11 // pred_region
        _
      $region16: #{tpu_custom_call.1} parent=11 // pred_fallthru
        _
      // Predicated region
      $region17: #{tpu_custom_call.1} parent=11 // pred_check
        %p198 = pneg %p81
      $region18: #{tpu_custom_call.1} parent=11 // pred_check_branch
        %200 = sbr.rel (%p198) target = $region20
      $region19: #{tpu_custom_call.1} parent=11 // pred_region
        _
      $region20: #{tpu_custom_call.1} parent=11 // pred_fallthru
        _
      // Predicated region
      $region21: #{tpu_custom_call.1} parent=11 // pred_check
        %p201 = pneg %p102
      $region22: #{tpu_custom_call.1} parent=11 // pred_check_branch
        %203 = sbr.rel (%p201) target = $region24
      $region23: #{tpu_custom_call.1} parent=11 // pred_region
        _
      $region24: #{tpu_custom_call.1} parent=11 // pred_fallthru
        _
    $region12: #{tpu_custom_call.1} parent=5 // pred_fallthru
      _
    %p204 = scmp.lt.s32.totalorder %s13, 2
    // Predicated region
    $region25: #{tpu_custom_call.1} parent=5 // pred_check
      %p205 = pneg %p204
    $region26: #{tpu_custom_call.1} parent=5 // pred_check_branch
      %207 = sbr.rel (%p205) target = $region28
    $region27: #{tpu_custom_call.1} parent=5 // pred_region
      // Predicated region
      $region29: #{tpu_custom_call.1} parent=27 // pred_check
        %p208 = pneg %p33
      $region30: #{tpu_custom_call.1} parent=27 // pred_check_branch
        %210 = sbr.rel (%p208) target = $region32
      $region31: #{tpu_custom_call.1} parent=27 // pred_region
        %s211 = smul.u32 16, %s13
        %p212 = scmp.lt.s32.totalorder %s211, 31
        %s213 = scalar_select %p212, %s211, 31
        %s214 = smul.addr %s213, 8
        %s215 = scalar_lea.vmem %s0, %s214
        %s216 = smul.u32 16, %s13
      $region32: #{tpu_custom_call.1} parent=27 // pred_fallthru
        _
    $region28: #{tpu_custom_call.1} parent=5 // pred_fallthru
      _
    %p217 = scmp.le.s32.totalorder 1, %s13
    %p218 = scmp.lt.s32.totalorder %s13, 3
    %p219 = pnand %p217, %p218
    %p220 = pneg %p219
    // Predicated region
    $region33: #{tpu_custom_call.1} parent=5 // pred_check
      _
    $region34: #{tpu_custom_call.1} parent=5 // pred_check_branch
      %222 = sbr.rel (%p219) target = $region36
    $region35: #{tpu_custom_call.1} parent=5 // pred_region
      %s223 = ssub.s32 %s13, 1
      %s224 = smul.u32 16, %s18
      %p225 = scmp.lt.s32.totalorder %s224, 31
      %s226 = scalar_select %p225, %s224, 31
      %s227 = smul.addr %s226, 8
      %s228 = scalar_lea.vmem %s0, %s227
      %p229 = pneg %p39
      %p230 = pneg %p36
      %p231 = pneg %p60
      %p232 = pneg %p57
      %p233 = pneg %p81
      %p234 = pneg %p78
      %p235 = pneg %p102
      %p236 = pneg %p99
      %p237 = pneg %p128
      %p238 = pneg %p125
      %s239 = smul.u32 16, %s18
      %p240 = scmp.lt.s32.totalorder %s239, 31
      %s241 = scalar_select %p240, %s239, 31
      %s242 = smul.addr %s241, 8
      %s243 = scalar_lea.vmem %s4, %s242
      %p244 = pneg %p154
      %p245 = pneg %p151
      %s246 = smul.u32 16, %s18
      %p247 = scmp.lt.s32.totalorder %s246, 31
      %s248 = scalar_select %p247, %s246, 31
      %s249 = smul.addr %s248, 8
      %s250 = scalar_lea.vmem %s5, %s249
      %p251 = pneg %p180
      %p252 = pneg %p177
      %s253 = smul.u32 16, %s18
      %p254 = scmp.lt.s32.totalorder %s253, 31
      %s255 = scalar_select %p254, %s253, 31
      %s256 = smul.addr %s255, 8
      %s257 = scalar_lea.vmem %s6, %s256
      %s258 = smul.u32 16, %s18
      %p259 = scmp.lt.s32.totalorder %s258, 31
      %s260 = scalar_select %p259, %s258, 31
      %s261 = smul.addr %s260, 8
      %s262 = scalar_lea.vmem %s0, %s261
      %s263 = smul.u32 16, %s18
      %s264 = smul.u32 16, %s18
      %p265 = scmp.lt.s32.totalorder %s264, 31
      %s266 = scalar_select %p265, %s264, 31
      %s267 = smul.addr %s266, 8
      %s268 = scalar_lea.vmem %s4, %s267
      %s269 = smul.u32 16, %s18
      %s270 = smul.u32 16, %s18
      %p271 = scmp.lt.s32.totalorder %s270, 31
      %s272 = scalar_select %p271, %s270, 31
      %s273 = smul.addr %s272, 8
      %s274 = scalar_lea.vmem %s5, %s273
      %s275 = smul.u32 16, %s18
      %s276 = smul.u32 16, %s18
      %p277 = scmp.lt.s32.totalorder %s276, 31
      %s278 = scalar_select %p277, %s276, 31
      %s279 = smul.addr %s278, 8
      %s280 = scalar_lea.vmem %s6, %s279
      %s281 = smul.u32 16, %s18
      %v282 = vld [vmem:[%s262] sm:$0xff]
      %v283 = vld [vmem:[%s262 + $0x8] sm:$0xff]
      %v284 = vld [vmem:[%s262 + $0x10] sm:$0xff]
      %v285 = vld [vmem:[%s262 + $0x18] sm:$0xff]
      %v286 = vld [vmem:[%s262 + $0x20] sm:$0xff]
      %v287 = vld [vmem:[%s262 + $0x28] sm:$0xff]
      %v288 = vld [vmem:[%s262 + $0x30] sm:$0xff]
      %v289 = vld [vmem:[%s262 + $0x38] sm:$0xff]
      %v290 = vld [vmem:[%s262 + $0x40] sm:$0xff]
      %v291 = vld [vmem:[%s262 + $0x48] sm:$0xff]
      %v292 = vld [vmem:[%s262 + $0x50] sm:$0xff]
      %v293 = vld [vmem:[%s262 + $0x58] sm:$0xff]
      %v294 = vld [vmem:[%s262 + $0x60] sm:$0xff]
      %v295 = vld [vmem:[%s262 + $0x68] sm:$0xff]
      %v296 = vld [vmem:[%s262 + $0x70] sm:$0xff]
      %v297 = vld [vmem:[%s262 + $0x78] sm:$0xff]
      %v298 = vld [vmem:[%s1] sm:$0xff]
      %vm299 = vcmask 64512
      %v301 = vsel %vm299, %v282, 0
      %v304 = vsel %vm299, %v283, 0
      %v307 = vsel %vm299, %v284, 0
      %v310 = vsel %vm299, %v285, 0
      %v313 = vsel %vm299, %v286, 0
      %v316 = vsel %vm299, %v287, 0
      %v319 = vsel %vm299, %v288, 0
      %v322 = vsel %vm299, %v289, 0
      %v325 = vsel %vm299, %v290, 0
      %v328 = vsel %vm299, %v291, 0
      %v331 = vsel %vm299, %v292, 0
      %v334 = vsel %vm299, %v293, 0
      %v337 = vsel %vm299, %v294, 0
      %v340 = vsel %vm299, %v295, 0
      %v343 = vsel %vm299, %v296, 0
      %v346 = vsel %vm299, %v297, 0
      %348 = vmatprep.subr.mxu0 0.0
      %349 = vmatpush1.msra.mxu0 %v298
      %350 = vmatprep.subr.mxu0 0.0
      %351 = vmatpush1.msra.mxu0 0.0
      %352 = vmatprep.subr.mxu0 0.0
      %353 = vmatpush1.msra.mxu0 0.0
      %354 = vmatprep.subr.mxu0 0.0
      %355 = vmatpush1.msra.mxu0 0.0
      %356 = vmatprep.subr.mxu0 0.0
      %357 = vmatpush1.msra.mxu0 0.0
      %358 = vmatprep.subr.mxu0 0.0
      %359 = vmatpush1.msra.mxu0 0.0
      %360 = vmatprep.subr.mxu0 0.0
      %361 = vmatpush1.msra.mxu0 0.0
      %362 = vmatprep.subr.mxu0 0.0
      %363 = vmatpush1.msra.mxu0 0.0
      %364 = vmatprep.subr.mxu0 0.0
      %365 = vmatpush1.msra.mxu0 0.0
      %366 = vmatprep.subr.mxu0 0.0
      %367 = vmatpush1.msra.mxu0 0.0
      %368 = vmatprep.subr.mxu0 0.0
      %369 = vmatpush1.msra.mxu0 0.0
      %370 = vmatprep.subr.mxu0 0.0
      %371 = vmatpush1.msra.mxu0 0.0
      %372 = vmatprep.subr.mxu0 0.0
      %373 = vmatpush1.msra.mxu0 0.0
      %374 = vmatprep.subr.mxu0 0.0
      %375 = vmatpush1.msra.mxu0 0.0
      %376 = vmatprep.subr.mxu0 0.0
      %377 = vmatpush1.msra.mxu0 0.0
      %378 = vmatprep.subr.mxu0 0.0
      %379 = vmatpush1.msra.mxu0 0.0
      %380 = vmatprep.subr.mxu0 0.0
      %381 = vmatpush1.msra.mxu0 0.0
      %382 = vmatprep.subr.mxu0 0.0
      %383 = vmatpush1.msra.mxu0 0.0
      %384 = vmatprep.subr.mxu0 0.0
      %385 = vmatpush1.msra.mxu0 0.0
      %386 = vmatprep.subr.mxu0 0.0
      %387 = vmatpush1.msra.mxu0 0.0
      %388 = vmatprep.subr.mxu0 0.0
      %389 = vmatpush1.msra.mxu0 0.0
      %390 = vmatprep.subr.mxu0 0.0
      %391 = vmatpush1.msra.mxu0 0.0
      %392 = vmatprep.subr.mxu0 0.0
      %393 = vmatpush1.msra.mxu0 0.0
      %394 = vmatprep.subr.mxu0 0.0
      %395 = vmatpush1.msra.mxu0 0.0
      %396 = vmatprep.subr.mxu0 0.0
      %397 = vmatpush1.msra.mxu0 0.0
      %398 = vmatprep.subr.mxu0 0.0
      %399 = vmatpush1.msra.mxu0 0.0
      %400 = vmatprep.subr.mxu0 0.0
      %401 = vmatpush1.msra.mxu0 0.0
      %402 = vmatprep.subr.mxu0 0.0
      %403 = vmatpush1.msra.mxu0 0.0
      %404 = vmatprep.subr.mxu0 0.0
      %405 = vmatpush1.msra.mxu0 0.0
      %406 = vmatprep.subr.mxu0 0.0
      %407 = vmatpush1.msra.mxu0 0.0
      %408 = vmatprep.subr.mxu0 0.0
      %409 = vmatpush1.msra.mxu0 0.0
      %410 = vmatprep.subr.mxu0 0.0
      %411 = vmatpush1.msra.mxu0 0.0
      %412 = vmatprep.mubr.f32.mxu0 0.0
      %413 = vmatmul.mubr.f32.gmra.mrb[0].mxu0 %v301
      %v414 = vpop.f32.mrb[0].mxu0
      %v415 = vadd.f32 0.0, %v414
      %v416 = vpop.f32.mrb[0].mxu0
      %417 = vmatprep.mubr.f32.mxu0 0.0
      %418 = vmatmul.mubr.f32.gmra.mrb[0].mxu0 %v304
      %v419 = vpop.f32.mrb[0].mxu0
      %v420 = vadd.f32 0.0, %v419
      %v421 = vpop.f32.mrb[0].mxu0
      %422 = vmatprep.mubr.f32.mxu0 0.0
      %423 = vmatmul.mubr.f32.gmra.mrb[0].mxu0 %v307
      %v424 = vpop.f32.mrb[0].mxu0
      %v425 = vadd.f32 0.0, %v424
      %v426 = vpop.f32.mrb[0].mxu0
      %427 = vmatprep.mubr.f32.mxu0 0.0
      %428 = vmatmul.mubr.f32.gmra.mrb[0].mxu0 %v310
      %v429 = vpop.f32.mrb[0].mxu0
      %v430 = vadd.f32 0.0, %v429
      %v431 = vpop.f32.mrb[0].mxu0
      %432 = vmatprep.mubr.f32.mxu0 0.0
      %433 = vmatmul.mubr.f32.gmra.mrb[0].mxu0 %v313
      %v434 = vpop.f32.mrb[0].mxu0
      %v435 = vadd.f32 0.0, %v434
      %v436 = vpop.f32.mrb[0].mxu0
      %437 = vmatprep.mubr.f32.mxu0 0.0
      %438 = vmatmul.mubr.f32.gmra.mrb[0].mxu0 %v316
      %v439 = vpop.f32.mrb[0].mxu0
      %v440 = vadd.f32 0.0, %v439
      %v441 = vpop.f32.mrb[0].mxu0
      %442 = vmatprep.mubr.f32.mxu0 0.0
      %443 = vmatmul.mubr.f32.gmra.mrb[0].mxu0 %v319
      %v444 = vpop.f32.mrb[0].mxu0
      %v445 = vadd.f32 0.0, %v444
      %v446 = vpop.f32.mrb[0].mxu0
      %447 = vmatprep.mubr.f32.mxu0 0.0
      %448 = vmatmul.mubr.f32.gmra.mrb[0].mxu0 %v322
      %v449 = vpop.f32.mrb[0].mxu0
      %v450 = vadd.f32 0.0, %v449
      %v451 = vpop.f32.mrb[0].mxu0
      %452 = vmatprep.mubr.f32.mxu0 0.0
      %453 = vmatmul.mubr.f32.gmra.mrb[0].mxu0 %v325
      %v454 = vpop.f32.mrb[0].mxu0
      %v455 = vadd.f32 0.0, %v454
      %v456 = vpop.f32.mrb[0].mxu0
      %457 = vmatprep.mubr.f32.mxu0 0.0
      %458 = vmatmul.mubr.f32.gmra.mrb[0].mxu0 %v328
      %v459 = vpop.f32.mrb[0].mxu0
      %v460 = vadd.f32 0.0, %v459
      %v461 = vpop.f32.mrb[0].mxu0
      %462 = vmatprep.mubr.f32.mxu0 0.0
      %463 = vmatmul.mubr.f32.gmra.mrb[0].mxu0 %v331
      %v464 = vpop.f32.mrb[0].mxu0
      %v465 = vadd.f32 0.0, %v464
      %v466 = vpop.f32.mrb[0].mxu0
      %467 = vmatprep.mubr.f32.mxu0 0.0
      %468 = vmatmul.mubr.f32.gmra.mrb[0].mxu0 %v334
      %v469 = vpop.f32.mrb[0].mxu0
      %v470 = vadd.f32 0.0, %v469
      %v471 = vpop.f32.mrb[0].mxu0
      %472 = vmatprep.mubr.f32.mxu0 0.0
      %473 = vmatmul.mubr.f32.gmra.mrb[0].mxu0 %v337
      %v474 = vpop.f32.mrb[0].mxu0
      %v475 = vadd.f32 0.0, %v474
      %v476 = vpop.f32.mrb[0].mxu0
      %477 = vmatprep.mubr.f32.mxu0 0.0
      %478 = vmatmul.mubr.f32.gmra.mrb[0].mxu0 %v340
      %v479 = vpop.f32.mrb[0].mxu0
      %v480 = vadd.f32 0.0, %v479
      %v481 = vpop.f32.mrb[0].mxu0
      %482 = vmatprep.mubr.f32.mxu0 0.0
      %483 = vmatmul.mubr.f32.gmra.mrb[0].mxu0 %v343
      %v484 = vpop.f32.mrb[0].mxu0
      %v485 = vadd.f32 0.0, %v484
      %v486 = vpop.f32.mrb[0].mxu0
      %487 = vmatprep.mubr.f32.mxu0 0.0
      %488 = vmatmul.mubr.f32.gmra.mrb[0].mxu0 %v346
      %v489 = vpop.f32.mrb[0].mxu0
      %v490 = vadd.f32 0.0, %v489
      %v491 = vpop.f32.mrb[0].mxu0
      %492 = vdwg.mxu0
      %vm493 = vcmask 261120
      %494 = vst.msk [vmem:[%s268] sm:$0xff] %vm493, %v415
      %495 = vst.msk [vmem:[%s268 + $0x8] sm:$0xff] %vm493, %v420
      %496 = vst.msk [vmem:[%s268 + $0x10] sm:$0xff] %vm493, %v425
      %497 = vst.msk [vmem:[%s268 + $0x18] sm:$0xff] %vm493, %v430
      %498 = vst.msk [vmem:[%s268 + $0x20] sm:$0xff] %vm493, %v435
      %499 = vst.msk [vmem:[%s268 + $0x28] sm:$0xff] %vm493, %v440
      %500 = vst.msk [vmem:[%s268 + $0x30] sm:$0xff] %vm493, %v445
      %501 = vst.msk [vmem:[%s268 + $0x38] sm:$0xff] %vm493, %v450
      %502 = vst.msk [vmem:[%s268 + $0x40] sm:$0xff] %vm493, %v455
      %503 = vst.msk [vmem:[%s268 + $0x48] sm:$0xff] %vm493, %v460
      %504 = vst.msk [vmem:[%s268 + $0x50] sm:$0xff] %vm493, %v465
      %505 = vst.msk [vmem:[%s268 + $0x58] sm:$0xff] %vm493, %v470
      %506 = vst.msk [vmem:[%s268 + $0x60] sm:$0xff] %vm493, %v475
      %507 = vst.msk [vmem:[%s268 + $0x68] sm:$0xff] %vm493, %v480
      %508 = vst.msk [vmem:[%s268 + $0x70] sm:$0xff] %vm493, %v485
      %509 = vst.msk [vmem:[%s268 + $0x78] sm:$0xff] %vm493, %v490
      %v510 = vld [vmem:[%s2] sm:$0xff]
      %v511 = vld [vmem:[%s2 + $0x8] sm:$0xff]
      %v512 = vld [vmem:[%s2 + $0x10] sm:$0xff]
      %v513 = vld [vmem:[%s2 + $0x18] sm:$0xff]
      %v515 = vsel %vm493, %v415, 0
      %v518 = vsel %vm493, %v420, 0
      %v521 = vsel %vm493, %v425, 0
      %v524 = vsel %vm493, %v430, 0
      %v527 = vsel %vm493, %v435, 0
      %v530 = vsel %vm493, %v440, 0
      %v533 = vsel %vm493, %v445, 0
      %v536 = vsel %vm493, %v450, 0
      %v539 = vsel %vm493, %v455, 0
      %v542 = vsel %vm493, %v460, 0
      %v545 = vsel %vm493, %v465, 0
      %v548 = vsel %vm493, %v470, 0
      %v551 = vsel %vm493, %v475, 0
      %v554 = vsel %vm493, %v480, 0
      %v557 = vsel %vm493, %v485, 0
      %v560 = vsel %vm493, %v490, 0
      %562 = vmatprep.subr.mxu0 0.0
      %563 = vmatpush1.msra.mxu0 %v510
      %564 = vmatprep.subr.mxu0 0.0
      %565 = vmatpush1.msra.mxu0 %v511
      %566 = vmatprep.subr.mxu0 0.0
      %567 = vmatpush1.msra.mxu0 %v512
      %568 = vmatprep.subr.mxu0 0.0
      %569 = vmatpush1.msra.mxu0 %v513
      %570 = vmatprep.subr.mxu0 0.0
      %571 = vmatpush1.msra.mxu0 0.0
      %572 = vmatprep.subr.mxu0 0.0
      %573 = vmatpush1.msra.mxu0 0.0
      %574 = vmatprep.subr.mxu0 0.0
      %575 = vmatpush1.msra.mxu0 0.0
      %576 = vmatprep.subr.mxu0 0.0
      %577 = vmatpush1.msra.mxu0 0.0
      %578 = vmatprep.subr.mxu0 0.0
      %579 = vmatpush1.msra.mxu0 0.0
      %580 = vmatprep.subr.mxu0 0.0
      %581 = vmatpush1.msra.mxu0 0.0
      %582 = vmatprep.subr.mxu0 0.0
      %583 = vmatpush1.msra.mxu0 0.0
      %584 = vmatprep.subr.mxu0 0.0
      %585 = vmatpush1.msra.mxu0 0.0
      %586 = vmatprep.subr.mxu0 0.0
      %587 = vmatpush1.msra.mxu0 0.0
      %588 = vmatprep.subr.mxu0 0.0
      %589 = vmatpush1.msra.mxu0 0.0
      %590 = vmatprep.subr.mxu0 0.0
      %591 = vmatpush1.msra.mxu0 0.0
      %592 = vmatprep.subr.mxu0 0.0
      %593 = vmatpush1.msra.mxu0 0.0
      %594 = vmatprep.subr.mxu0 0.0
      %595 = vmatpush1.msra.mxu0 0.0
      %596 = vmatprep.subr.mxu0 0.0
      %597 = vmatpush1.msra.mxu0 0.0
      %598 = vmatprep.subr.mxu0 0.0
      %599 = vmatpush1.msra.mxu0 0.0
      %600 = vmatprep.subr.mxu0 0.0
      %601 = vmatpush1.msra.mxu0 0.0
      %602 = vmatprep.subr.mxu0 0.0
      %603 = vmatpush1.msra.mxu0 0.0
      %604 = vmatprep.subr.mxu0 0.0
      %605 = vmatpush1.msra.mxu0 0.0
      %606 = vmatprep.subr.mxu0 0.0
      %607 = vmatpush1.msra.mxu0 0.0
      %608 = vmatprep.subr.mxu0 0.0
      %609 = vmatpush1.msra.mxu0 0.0
      %610 = vmatprep.subr.mxu0 0.0
      %611 = vmatpush1.msra.mxu0 0.0
      %612 = vmatprep.subr.mxu0 0.0
      %613 = vmatpush1.msra.mxu0 0.0
      %614 = vmatprep.subr.mxu0 0.0
      %615 = vmatpush1.msra.mxu0 0.0
      %616 = vmatprep.subr.mxu0 0.0
      %617 = vmatpush1.msra.mxu0 0.0
      %618 = vmatprep.subr.mxu0 0.0
      %619 = vmatpush1.msra.mxu0 0.0
      %620 = vmatprep.subr.mxu0 0.0
      %621 = vmatpush1.msra.mxu0 0.0
      %622 = vmatprep.subr.mxu0 0.0
      %623 = vmatpush1.msra.mxu0 0.0
      %624 = vmatprep.subr.mxu0 0.0
      %625 = vmatpush1.msra.mxu0 0.0
      %626 = vmatprep.mubr.f32.mxu0 0.0
      %627 = vmatmul.mubr.f32.gmra.mrb[0].mxu0 %v515
      %v628 = vpop.f32.mrb[0].mxu0
      %v629 = vadd.f32 0.0, %v628
      %v630 = vpop.f32.mrb[0].mxu0
      %631 = vmatprep.mubr.f32.mxu0 0.0
      %632 = vmatmul.mubr.f32.gmra.mrb[0].mxu0 %v518
      %v633 = vpop.f32.mrb[0].mxu0
      %v634 = vadd.f32 0.0, %v633
      %v635 = vpop.f32.mrb[0].mxu0
      %636 = vmatprep.mubr.f32.mxu0 0.0
      %637 = vmatmul.mubr.f32.gmra.mrb[0].mxu0 %v521
      %v638 = vpop.f32.mrb[0].mxu0
      %v639 = vadd.f32 0.0, %v638
      %v640 = vpop.f32.mrb[0].mxu0
      %641 = vmatprep.mubr.f32.mxu0 0.0
      %642 = vmatmul.mubr.f32.gmra.mrb[0].mxu0 %v524
      %v643 = vpop.f32.mrb[0].mxu0
      %v644 = vadd.f32 0.0, %v643
      %v645 = vpop.f32.mrb[0].mxu0
      %646 = vmatprep.mubr.f32.mxu0 0.0
      %647 = vmatmul.mubr.f32.gmra.mrb[0].mxu0 %v527
      %v648 = vpop.f32.mrb[0].mxu0
      %v649 = vadd.f32 0.0, %v648
      %v650 = vpop.f32.mrb[0].mxu0
      %651 = vmatprep.mubr.f32.mxu0 0.0
      %652 = vmatmul.mubr.f32.gmra.mrb[0].mxu0 %v530
      %v653 = vpop.f32.mrb[0].mxu0
      %v654 = vadd.f32 0.0, %v653
      %v655 = vpop.f32.mrb[0].mxu0
      %656 = vmatprep.mubr.f32.mxu0 0.0
      %657 = vmatmul.mubr.f32.gmra.mrb[0].mxu0 %v533
      %v658 = vpop.f32.mrb[0].mxu0
      %v659 = vadd.f32 0.0, %v658
      %v660 = vpop.f32.mrb[0].mxu0
      %661 = vmatprep.mubr.f32.mxu0 0.0
      %662 = vmatmul.mubr.f32.gmra.mrb[0].mxu0 %v536
      %v663 = vpop.f32.mrb[0].mxu0
      %v664 = vadd.f32 0.0, %v663
      %v665 = vpop.f32.mrb[0].mxu0
      %666 = vmatprep.mubr.f32.mxu0 0.0
      %667 = vmatmul.mubr.f32.gmra.mrb[0].mxu0 %v539
      %v668 = vpop.f32.mrb[0].mxu0
      %v669 = vadd.f32 0.0, %v668
      %v670 = vpop.f32.mrb[0].mxu0
      %671 = vmatprep.mubr.f32.mxu0 0.0
      %672 = vmatmul.mubr.f32.gmra.mrb[0].mxu0 %v542
      %v673 = vpop.f32.mrb[0].mxu0
      %v674 = vadd.f32 0.0, %v673
      %v675 = vpop.f32.mrb[0].mxu0
      %676 = vmatprep.mubr.f32.mxu0 0.0
      %677 = vmatmul.mubr.f32.gmra.mrb[0].mxu0 %v545
      %v678 = vpop.f32.mrb[0].mxu0
      %v679 = vadd.f32 0.0, %v678
      %v680 = vpop.f32.mrb[0].mxu0
      %681 = vmatprep.mubr.f32.mxu0 0.0
      %682 = vmatmul.mubr.f32.gmra.mrb[0].mxu0 %v548
      %v683 = vpop.f32.mrb[0].mxu0
      %v684 = vadd.f32 0.0, %v683
      %v685 = vpop.f32.mrb[0].mxu0
      %686 = vmatprep.mubr.f32.mxu0 0.0
      %687 = vmatmul.mubr.f32.gmra.mrb[0].mxu0 %v551
      %v688 = vpop.f32.mrb[0].mxu0
      %v689 = vadd.f32 0.0, %v688
      %v690 = vpop.f32.mrb[0].mxu0
      %691 = vmatprep.mubr.f32.mxu0 0.0
      %692 = vmatmul.mubr.f32.gmra.mrb[0].mxu0 %v554
      %v693 = vpop.f32.mrb[0].mxu0
      %v694 = vadd.f32 0.0, %v693
      %v695 = vpop.f32.mrb[0].mxu0
      %696 = vmatprep.mubr.f32.mxu0 0.0
      %697 = vmatmul.mubr.f32.gmra.mrb[0].mxu0 %v557
      %v698 = vpop.f32.mrb[0].mxu0
      %v699 = vadd.f32 0.0, %v698
      %v700 = vpop.f32.mrb[0].mxu0
      %701 = vmatprep.mubr.f32.mxu0 0.0
      %702 = vmatmul.mubr.f32.gmra.mrb[0].mxu0 %v560
      %v703 = vpop.f32.mrb[0].mxu0
      %v704 = vadd.f32 0.0, %v703
      %v705 = vpop.f32.mrb[0].mxu0
      %706 = vdwg.mxu0
      %vm707 = vcmask 31744
      %708 = vst.msk [vmem:[%s274] sm:$0xff] %vm707, %v629
      %709 = vst.msk [vmem:[%s274 + $0x8] sm:$0xff] %vm707, %v634
      %710 = vst.msk [vmem:[%s274 + $0x10] sm:$0xff] %vm707, %v639
      %711 = vst.msk [vmem:[%s274 + $0x18] sm:$0xff] %vm707, %v644
      %712 = vst.msk [vmem:[%s274 + $0x20] sm:$0xff] %vm707, %v649
      %713 = vst.msk [vmem:[%s274 + $0x28] sm:$0xff] %vm707, %v654
      %714 = vst.msk [vmem:[%s274 + $0x30] sm:$0xff] %vm707, %v659
      %715 = vst.msk [vmem:[%s274 + $0x38] sm:$0xff] %vm707, %v664
      %716 = vst.msk [vmem:[%s274 + $0x40] sm:$0xff] %vm707, %v669
      %717 = vst.msk [vmem:[%s274 + $0x48] sm:$0xff] %vm707, %v674
      %718 = vst.msk [vmem:[%s274 + $0x50] sm:$0xff] %vm707, %v679
      %719 = vst.msk [vmem:[%s274 + $0x58] sm:$0xff] %vm707, %v684
      %720 = vst.msk [vmem:[%s274 + $0x60] sm:$0xff] %vm707, %v689
      %721 = vst.msk [vmem:[%s274 + $0x68] sm:$0xff] %vm707, %v694
      %722 = vst.msk [vmem:[%s274 + $0x70] sm:$0xff] %vm707, %v699
      %723 = vst.msk [vmem:[%s274 + $0x78] sm:$0xff] %vm707, %v704
      %v724 = vld [vmem:[%s3] sm:$0xff]
      %v725 = vld [vmem:[%s3 + $0x8] sm:$0xff]
      %v726 = vld [vmem:[%s3 + $0x10] sm:$0xff]
      %v727 = vld [vmem:[%s3 + $0x18] sm:$0xff]
      %728 = vmatprep.subr.mxu0 0.0
      %729 = vmatpush1.msra.mxu0 %v724
      %730 = vmatprep.subr.mxu0 0.0
      %731 = vmatpush1.msra.mxu0 %v725
      %732 = vmatprep.subr.mxu0 0.0
      %733 = vmatpush1.msra.mxu0 %v726
      %734 = vmatprep.subr.mxu0 0.0
      %735 = vmatpush1.msra.mxu0 %v727
      %736 = vmatprep.subr.mxu0 0.0
      %737 = vmatpush1.msra.mxu0 0.0
      %738 = vmatprep.subr.mxu0 0.0
      %739 = vmatpush1.msra.mxu0 0.0
      %740 = vmatprep.subr.mxu0 0.0
      %741 = vmatpush1.msra.mxu0 0.0
      %742 = vmatprep.subr.mxu0 0.0
      %743 = vmatpush1.msra.mxu0 0.0
      %744 = vmatprep.subr.mxu0 0.0
      %745 = vmatpush1.msra.mxu0 0.0
      %746 = vmatprep.subr.mxu0 0.0
      %747 = vmatpush1.msra.mxu0 0.0
      %748 = vmatprep.subr.mxu0 0.0
      %749 = vmatpush1.msra.mxu0 0.0
      %750 = vmatprep.subr.mxu0 0.0
      %751 = vmatpush1.msra.mxu0 0.0
      %752 = vmatprep.subr.mxu0 0.0
      %753 = vmatpush1.msra.mxu0 0.0
      %754 = vmatprep.subr.mxu0 0.0
      %755 = vmatpush1.msra.mxu0 0.0
      %756 = vmatprep.subr.mxu0 0.0
      %757 = vmatpush1.msra.mxu0 0.0
      %758 = vmatprep.subr.mxu0 0.0
      %759 = vmatpush1.msra.mxu0 0.0
      %760 = vmatprep.subr.mxu0 0.0
      %761 = vmatpush1.msra.mxu0 0.0
      %762 = vmatprep.subr.mxu0 0.0
      %763 = vmatpush1.msra.mxu0 0.0
      %764 = vmatprep.subr.mxu0 0.0
      %765 = vmatpush1.msra.mxu0 0.0
      %766 = vmatprep.subr.mxu0 0.0
      %767 = vmatpush1.msra.mxu0 0.0
      %768 = vmatprep.subr.mxu0 0.0
      %769 = vmatpush1.msra.mxu0 0.0
      %770 = vmatprep.subr.mxu0 0.0
      %771 = vmatpush1.msra.mxu0 0.0
      %772 = vmatprep.subr.mxu0 0.0
      %773 = vmatpush1.msra.mxu0 0.0
      %774 = vmatprep.subr.mxu0 0.0
      %775 = vmatpush1.msra.mxu0 0.0
      %776 = vmatprep.subr.mxu0 0.0
      %777 = vmatpush1.msra.mxu0 0.0
      %778 = vmatprep.subr.mxu0 0.0
      %779 = vmatpush1.msra.mxu0 0.0
      %780 = vmatprep.subr.mxu0 0.0
      %781 = vmatpush1.msra.mxu0 0.0
      %782 = vmatprep.subr.mxu0 0.0
      %783 = vmatpush1.msra.mxu0 0.0
      %784 = vmatprep.subr.mxu0 0.0
      %785 = vmatpush1.msra.mxu0 0.0
      %786 = vmatprep.subr.mxu0 0.0
      %787 = vmatpush1.msra.mxu0 0.0
      %788 = vmatprep.subr.mxu0 0.0
      %789 = vmatpush1.msra.mxu0 0.0
      %790 = vmatprep.subr.mxu0 0.0
      %791 = vmatpush1.msra.mxu0 0.0
      %792 = vmatprep.mubr.f32.mxu0 0.0
      %793 = vmatmul.mubr.f32.gmra.mrb[0].mxu0 %v515
      %v794 = vpop.f32.mrb[0].mxu0
      %v795 = vadd.f32 0.0, %v794
      %v796 = vpop.f32.mrb[0].mxu0
      %797 = vmatprep.mubr.f32.mxu0 0.0
      %798 = vmatmul.mubr.f32.gmra.mrb[0].mxu0 %v518
      %v799 = vpop.f32.mrb[0].mxu0
      %v800 = vadd.f32 0.0, %v799
      %v801 = vpop.f32.mrb[0].mxu0
      %802 = vmatprep.mubr.f32.mxu0 0.0
      %803 = vmatmul.mubr.f32.gmra.mrb[0].mxu0 %v521
      %v804 = vpop.f32.mrb[0].mxu0
      %v805 = vadd.f32 0.0, %v804
      %v806 = vpop.f32.mrb[0].mxu0
      %807 = vmatprep.mubr.f32.mxu0 0.0
      %808 = vmatmul.mubr.f32.gmra.mrb[0].mxu0 %v524
      %v809 = vpop.f32.mrb[0].mxu0
      %v810 = vadd.f32 0.0, %v809
      %v811 = vpop.f32.mrb[0].mxu0
      %812 = vmatprep.mubr.f32.mxu0 0.0
      %813 = vmatmul.mubr.f32.gmra.mrb[0].mxu0 %v527
      %v814 = vpop.f32.mrb[0].mxu0
      %v815 = vadd.f32 0.0, %v814
      %v816 = vpop.f32.mrb[0].mxu0
      %817 = vmatprep.mubr.f32.mxu0 0.0
      %818 = vmatmul.mubr.f32.gmra.mrb[0].mxu0 %v530
      %v819 = vpop.f32.mrb[0].mxu0
      %v820 = vadd.f32 0.0, %v819
      %v821 = vpop.f32.mrb[0].mxu0
      %822 = vmatprep.mubr.f32.mxu0 0.0
      %823 = vmatmul.mubr.f32.gmra.mrb[0].mxu0 %v533
      %v824 = vpop.f32.mrb[0].mxu0
      %v825 = vadd.f32 0.0, %v824
      %v826 = vpop.f32.mrb[0].mxu0
      %827 = vmatprep.mubr.f32.mxu0 0.0
      %828 = vmatmul.mubr.f32.gmra.mrb[0].mxu0 %v536
      %v829 = vpop.f32.mrb[0].mxu0
      %v830 = vadd.f32 0.0, %v829
      %v831 = vpop.f32.mrb[0].mxu0
      %832 = vmatprep.mubr.f32.mxu0 0.0
      %833 = vmatmul.mubr.f32.gmra.mrb[0].mxu0 %v539
      %v834 = vpop.f32.mrb[0].mxu0
      %v835 = vadd.f32 0.0, %v834
      %v836 = vpop.f32.mrb[0].mxu0
      %837 = vmatprep.mubr.f32.mxu0 0.0
      %838 = vmatmul.mubr.f32.gmra.mrb[0].mxu0 %v542
      %v839 = vpop.f32.mrb[0].mxu0
      %v840 = vadd.f32 0.0, %v839
      %v841 = vpop.f32.mrb[0].mxu0
      %842 = vmatprep.mubr.f32.mxu0 0.0
      %843 = vmatmul.mubr.f32.gmra.mrb[0].mxu0 %v545
      %v844 = vpop.f32.mrb[0].mxu0
      %v845 = vadd.f32 0.0, %v844
      %v846 = vpop.f32.mrb[0].mxu0
      %847 = vmatprep.mubr.f32.mxu0 0.0
      %848 = vmatmul.mubr.f32.gmra.mrb[0].mxu0 %v548
      %v849 = vpop.f32.mrb[0].mxu0
      %v850 = vadd.f32 0.0, %v849
      %v851 = vpop.f32.mrb[0].mxu0
      %852 = vmatprep.mubr.f32.mxu0 0.0
      %853 = vmatmul.mubr.f32.gmra.mrb[0].mxu0 %v551
      %v854 = vpop.f32.mrb[0].mxu0
      %v855 = vadd.f32 0.0, %v854
      %v856 = vpop.f32.mrb[0].mxu0
      %857 = vmatprep.mubr.f32.mxu0 0.0
      %858 = vmatmul.mubr.f32.gmra.mrb[0].mxu0 %v554
      %v859 = vpop.f32.mrb[0].mxu0
      %v860 = vadd.f32 0.0, %v859
      %v861 = vpop.f32.mrb[0].mxu0
      %862 = vmatprep.mubr.f32.mxu0 0.0
      %863 = vmatmul.mubr.f32.gmra.mrb[0].mxu0 %v557
      %v864 = vpop.f32.mrb[0].mxu0
      %v865 = vadd.f32 0.0, %v864
      %v866 = vpop.f32.mrb[0].mxu0
      %867 = vmatprep.mubr.f32.mxu0 0.0
      %868 = vmatmul.mubr.f32.gmra.mrb[0].mxu0 %v560
      %v869 = vpop.f32.mrb[0].mxu0
      %v870 = vadd.f32 0.0, %v869
      %v871 = vpop.f32.mrb[0].mxu0
      %872 = vdwg.mxu0
      %873 = vst.msk [vmem:[%s280] sm:$0xff] %vm707, %v795
      %874 = vst.msk [vmem:[%s280 + $0x8] sm:$0xff] %vm707, %v800
      %875 = vst.msk [vmem:[%s280 + $0x10] sm:$0xff] %vm707, %v805
      %876 = vst.msk [vmem:[%s280 + $0x18] sm:$0xff] %vm707, %v810
      %877 = vst.msk [vmem:[%s280 + $0x20] sm:$0xff] %vm707, %v815
      %878 = vst.msk [vmem:[%s280 + $0x28] sm:$0xff] %vm707, %v820
      %879 = vst.msk [vmem:[%s280 + $0x30] sm:$0xff] %vm707, %v825
      %880 = vst.msk [vmem:[%s280 + $0x38] sm:$0xff] %vm707, %v830
      %881 = vst.msk [vmem:[%s280 + $0x40] sm:$0xff] %vm707, %v835
      %882 = vst.msk [vmem:[%s280 + $0x48] sm:$0xff] %vm707, %v840
      %883 = vst.msk [vmem:[%s280 + $0x50] sm:$0xff] %vm707, %v845
      %884 = vst.msk [vmem:[%s280 + $0x58] sm:$0xff] %vm707, %v850
      %885 = vst.msk [vmem:[%s280 + $0x60] sm:$0xff] %vm707, %v855
      %886 = vst.msk [vmem:[%s280 + $0x68] sm:$0xff] %vm707, %v860
      %887 = vst.msk [vmem:[%s280 + $0x70] sm:$0xff] %vm707, %v865
      %888 = vst.msk [vmem:[%s280 + $0x78] sm:$0xff] %vm707, %v870
      %s889 = smul.u32 16, %s18
      %p890 = scmp.lt.s32.totalorder %s889, 31
      %s891 = scalar_select %p890, %s889, 31
      %s892 = smul.addr %s891, 8
      %s893 = scalar_lea.vmem %s4, %s892
      %s894 = smul.u32 16, %s18
      %p895 = scmp.lt.s32.totalorder %s894, 31
      %s896 = scalar_select %p895, %s894, 31
      %s897 = smul.addr %s896, 8
      %s898 = scalar_lea.vmem %s5, %s897
      %s899 = smul.u32 16, %s18
      %p900 = scmp.lt.s32.totalorder %s899, 31
      %s901 = scalar_select %p900, %s899, 31
      %s902 = smul.addr %s901, 8
      %s903 = scalar_lea.vmem %s6, %s902
      // Predicated region
      $region37: #{tpu_custom_call.1} parent=35 // pred_check
        %p904 = pneg %p125
      $region38: #{tpu_custom_call.1} parent=35 // pred_check_branch
        %906 = sbr.rel (%p904) target = $region40
      $region39: #{tpu_custom_call.1} parent=35 // pred_region
        %s907 = smul.u32 16, %s18
      $region40: #{tpu_custom_call.1} parent=35 // pred_fallthru
        _
      // Predicated region
      $region41: #{tpu_custom_call.1} parent=35 // pred_check
        %p908 = pneg %p151
      $region42: #{tpu_custom_call.1} parent=35 // pred_check_branch
        %910 = sbr.rel (%p908) target = $region44
      $region43: #{tpu_custom_call.1} parent=35 // pred_region
        %s911 = smul.u32 16, %s18
      $region44: #{tpu_custom_call.1} parent=35 // pred_fallthru
        _
      // Predicated region
      $region45: #{tpu_custom_call.1} parent=35 // pred_check
        %p912 = pneg %p177
      $region46: #{tpu_custom_call.1} parent=35 // pred_check_branch
        %914 = sbr.rel (%p912) target = $region48
      $region47: #{tpu_custom_call.1} parent=35 // pred_region
        %s915 = smul.u32 16, %s18
      $region48: #{tpu_custom_call.1} parent=35 // pred_fallthru
        _
    $region36: #{tpu_custom_call.1} parent=5 // pred_fallthru
      _
    %p916 = scmp.le.s32.totalorder 2, %s13
    // Predicated region
    $region49: #{tpu_custom_call.1} parent=5 // pred_check
      %p917 = pneg %p916
    $region50: #{tpu_custom_call.1} parent=5 // pred_check_branch
      %919 = sbr.rel (%p917) target = $region52
    $region51: #{tpu_custom_call.1} parent=5 // pred_region
      %s920 = ssub.s32 %s13, 2
      // Predicated region
      $region53: #{tpu_custom_call.1} parent=51 // pred_check
        %p921 = pneg %p131
      $region54: #{tpu_custom_call.1} parent=51 // pred_check_branch
        %923 = sbr.rel (%p921) target = $region56
      $region55: #{tpu_custom_call.1} parent=51 // pred_region
        %s924 = smul.u32 16, %s19
        %p925 = scmp.lt.s32.totalorder %s924, 31
        %s926 = scalar_select %p925, %s924, 31
        %s927 = smul.addr %s926, 8
        %s928 = scalar_lea.vmem %s4, %s927
      $region56: #{tpu_custom_call.1} parent=51 // pred_fallthru
        _
      // Predicated region
      $region57: #{tpu_custom_call.1} parent=51 // pred_check
        %p929 = pneg %p157
      $region58: #{tpu_custom_call.1} parent=51 // pred_check_branch
        %931 = sbr.rel (%p929) target = $region60
      $region59: #{tpu_custom_call.1} parent=51 // pred_region
        %s932 = smul.u32 16, %s19
        %p933 = scmp.lt.s32.totalorder %s932, 31
        %s934 = scalar_select %p933, %s932, 31
        %s935 = smul.addr %s934, 8
        %s936 = scalar_lea.vmem %s5, %s935
      $region60: #{tpu_custom_call.1} parent=51 // pred_fallthru
        _
      // Predicated region
      $region61: #{tpu_custom_call.1} parent=51 // pred_check
        %p937 = pneg %p183
      $region62: #{tpu_custom_call.1} parent=51 // pred_check_branch
        %939 = sbr.rel (%p937) target = $region64
      $region63: #{tpu_custom_call.1} parent=51 // pred_region
        %s940 = smul.u32 16, %s19
        %p941 = scmp.lt.s32.totalorder %s940, 31
        %s942 = scalar_select %p941, %s940, 31
        %s943 = smul.addr %s942, 8
        %s944 = scalar_lea.vmem %s6, %s943
      $region64: #{tpu_custom_call.1} parent=51 // pred_fallthru
        _
    $region52: #{tpu_custom_call.1} parent=5 // pred_fallthru
      _
  $region6: #{tpu_custom_call.1} parent=0 // loop_footer
    %s17 = sadd.s32 1, %s13
  $region7: #{tpu_custom_call.1} parent=0 // loop_footer_branch
    %12 = sbr.rel target = $region3
  $region8: #{tpu_custom_call.1} parent=0 // loop_exit
    _

</llo_original>
